<compile_context>
chip_gen: v5e
topology: v5e:2x2
jax: 0.10.0
libtpu: 0.0.40
codegen_flags: <defaults>
</compile_context>

<pallas_src>
import functools

import jax
import jax.numpy as jnp
from jax import lax
from jax.experimental import pallas as pl
from jax.experimental.pallas import tpu as pltpu


def _surface_loss_kernel(x_ref, d_ref, out_ref, *, tile_s, total_s):
    """(1, C, TILE_S) logits + (1, 1, TILE_S) dist -> (1, 1, 1) partial sum."""
    x = x_ref[...].astype(jnp.float32)            # (1, C, TS) logits
    d = d_ref[...].astype(jnp.float32)            # (1, 1, TS) distance map

    # softmax(x)[class=1] = 1 / sum_c exp(x_c - x_1).  Max-free and safe:
    # overflow -> denom = +inf -> pc = 0 (correct limit); underflow only
    # drops negligible terms.
    x1 = x[:, 1:2, :]                                            # (1, 1, TS)
    denom = jnp.sum(jnp.exp(x - x1), axis=1, keepdims=True)      # (1, 1, TS)
    prod = d / denom                                             # == pc * dist

    if total_s % tile_s != 0:
        # Ragged last tile: mask lanes past the true spatial extent
        # (out-of-bounds block reads are unspecified values -> zero them).
        j = pl.program_id(1)
        lane = lax.broadcasted_iota(jnp.int32, prod.shape, 2)
        prod = jnp.where(j * tile_s + lane < total_s, prod, 0.0)

    # Lane reduction -> per-tile partial sum.
    out_ref[...] = jnp.sum(prod, axis=-1, keepdims=True)


def _pick_tile_s(S, C, target_bytes=4 << 20):
    """Spatial tile: multiple of 128, ~target_bytes of f32 logits per step."""
    max_elems = max(128, (target_bytes // (C * 4)) // 128 * 128)
    if S <= max_elems:
        return S                        # single tile; block == full dim is legal
    # Prefer the largest multiple-of-128 tile <= max_elems that divides S
    # exactly (no masked remainder tile); otherwise just use max_elems.
    t = max_elems
    while t >= 128:
        if S % t == 0:
            return t
        t -= 128
    return max_elems


def surface_loss(logits, dist_map, *, tile_s=None):
    """logits: (N, C, *spatial); dist_map: (N, *spatial) with the same spatial size."""
    N, C = logits.shape[0], logits.shape[1]
    assert C >= 2, "SurfaceLoss uses the probability of class index 1"
    S = 1
    for s in logits.shape[2:]:
        S *= s
    assert dist_map.shape[0] == N and dist_map.size == N * S

    x = logits.reshape(N, C, S)       # class on sublanes, spatial on lanes
    d = dist_map.reshape(N, 1, S)     # spatial last -> lane-dense loads

    if tile_s is None:
        tile_s = _pick_tile_s(S, C)
    num_tiles = pl.cdiv(S, tile_s)

    kernel = functools.partial(_surface_loss_kernel, tile_s=tile_s, total_s=S)

    partials = pl.pallas_call(
        kernel,
        out_shape=jax.ShapeDtypeStruct((N * num_tiles, 1, 1), jnp.float32),
        grid_spec=pltpu.PrefetchScalarGridSpec(
            num_scalar_prefetch=0,
            grid=(N, num_tiles),
            in_specs=[
                pl.BlockSpec((1, C, tile_s), lambda n, j: (n, 0, j)),  # logits
                pl.BlockSpec((1, 1, tile_s), lambda n, j: (n, 0, j)),  # dist map
            ],
            out_specs=pl.BlockSpec(
                (1, 1, 1), lambda n, j: (n * num_tiles + j, 0, 0)),
        ),
        compiler_params=pltpu.CompilerParams(
            dimension_semantics=("parallel", "parallel"),
            vmem_limit_bytes=32 * 1024 * 1024),
    )(x, d)

    # Tiny final reduction + mean in plain JAX (tree reduce, no serial RMW chain).
    return jnp.sum(partials) / jnp.float32(N * S)


def surface_loss_ref(logits, dist_map):
    """Pure-JAX reference mirroring the PyTorch forward."""
    pc = jax.nn.softmax(logits.astype(jnp.float32), axis=1)[:, 1]
    return jnp.mean(pc * dist_map.astype(jnp.float32))


if __name__ == "__main__":
    key = jax.random.PRNGKey(0)
    kx, kd = jax.random.split(key)

    # 5-D input as the module's forward implies: (N, C, D, H, W); S = 256.
    N, C, D, H, W = 2, 4, 4, 8, 8
    x = jax.random.normal(kx, (N, C, D, H, W), dtype=jnp.float32)
    dist_map = jax.random.uniform(kd, (N, D, H, W), dtype=jnp.float32)

    out = surface_loss(x, dist_map)
    out = jax.block_until_ready(out)

    ref = surface_loss_ref(x, dist_map)
    assert jnp.allclose(out, ref, rtol=1e-5, atol=1e-6), (out, ref)

    print("KERNEL_OK")
</pallas_src>

<mosaic_0001>
module attributes {stable_mosaic.version = 11 : i64} {
  func.func @_surface_loss_kernel(%arg0: i32, %arg1: i32, %arg2: memref<1x4x256xf32, #tpu.memory_space<vmem>>, %arg3: memref<1x1x256xf32, #tpu.memory_space<vmem>>, %arg4: memref<1x1x1xf32, #tpu.memory_space<vmem>>) attributes {dimension_semantics = [#tpu.dimension_semantics<parallel>, #tpu.dimension_semantics<parallel>], iteration_bounds = array<i64: 2, 1>, scalar_prefetch = 0 : i64, scratch_operands = 0 : i64, tpu.core_type = #tpu.core_type<tc>, window_params = [{transform_indices = @transform_0, window_bounds = array<i64: 1, 4, 256>}, {transform_indices = @transform_1, window_bounds = array<i64: 1, 1, 256>}, {transform_indices = @transform_2, window_bounds = array<i64: 1, 1, 1>}]} {
    %c0 = arith.constant 0 : index
    %c0_0 = arith.constant 0 : index
    %c0_1 = arith.constant 0 : index
    %0 = vector.load %arg2[%c0, %c0_0, %c0_1] : memref<1x4x256xf32, #tpu.memory_space<vmem>>, vector<1x4x256xf32>
    %c0_2 = arith.constant 0 : index
    %c0_3 = arith.constant 0 : index
    %c0_4 = arith.constant 0 : index
    %1 = vector.load %arg3[%c0_2, %c0_3, %c0_4] : memref<1x1x256xf32, #tpu.memory_space<vmem>>, vector<1x1x256xf32>
    %2 = vector.extract_strided_slice %0 {offsets = [0, 1, 0], sizes = [1, 1, 256], strides = [1, 1, 1]} : vector<1x4x256xf32> to vector<1x1x256xf32>
    %3 = vector.broadcast %2 : vector<1x1x256xf32> to vector<1x4x256xf32>
    %4 = arith.subf %0, %3 : vector<1x4x256xf32>
    %5 = math.exp %4 : vector<1x4x256xf32>
    %cst = arith.constant dense<0.000000e+00> : vector<1x256xf32>
    %6 = vector.multi_reduction <add>, %5, %cst [1] : vector<1x4x256xf32> to vector<1x256xf32>
    %7 = vector.shape_cast %6 : vector<1x256xf32> to vector<1x1x256xf32>
    %8 = arith.divf %1, %7 : vector<1x1x256xf32>
    %cst_5 = arith.constant dense<0.000000e+00> : vector<1x1xf32>
    %9 = vector.multi_reduction <add>, %8, %cst_5 [2] : vector<1x1x256xf32> to vector<1x1xf32>
    %10 = vector.shape_cast %9 : vector<1x1xf32> to vector<1x1x1xf32>
    %c0_6 = arith.constant 0 : index
    %c0_7 = arith.constant 0 : index
    %c0_8 = arith.constant 0 : index
    %11 = vector.load %arg4[%c0_6, %c0_7, %c0_8] : memref<1x1x1xf32, #tpu.memory_space<vmem>>, vector<1x1x1xf32>
    tpu.vector_store %arg4[%c0_6, %c0_7, %c0_8], %10 {strides = array<i32>} : memref<1x1x1xf32, #tpu.memory_space<vmem>>, vector<1x1x1xf32>,
    return
  }
  func.func @transform_0(%arg0: i32, %arg1: i32) -> (i32, i32, i32) {
    %c0_i32 = arith.constant 0 : i32
    %c0_i32_0 = arith.constant 0 : i32
    return %arg0, %c0_i32, %arg1 : i32, i32, i32
  }
  func.func @transform_1(%arg0: i32, %arg1: i32) -> (i32, i32, i32) {
    %c0_i32 = arith.constant 0 : i32
    %c0_i32_0 = arith.constant 0 : i32
    return %arg0, %c0_i32, %arg1 : i32, i32, i32
  }
  func.func @transform_2(%arg0: i32, %arg1: i32) -> (i32, i32, i32) {
    %c1_i32 = arith.constant 1 : i32
    %0 = arith.muli %arg0, %c1_i32 : i32
    %1 = arith.addi %0, %arg1 : i32
    %c0_i32 = arith.constant 0 : i32
    %c0_i32_0 = arith.constant 0 : i32
    %c0_i32_1 = arith.constant 0 : i32
    return %1, %c0_i32, %c0_i32_0 : i32, i32, i32
  }
}

</mosaic_0001>

<llo_original>
// kernel: tpu_custom_call.1
$region0: #{tpu_custom_call.1}
  #allocation0 [shape = 'u32[]', space=smem, size = 0x4, offset = 0x4, fixed_abs, tag = 'smem constant byte address 0x4 - core index']
  #allocation1 [shape = 'u32[72,128]{1,0:T(1,128)}', space=vmem, size = 0x9000, scoped, tag = 'internal scratch']
  %s0 = inlined_call_operand.hbm [shape: f32[2,4,256], index: 0, kind: input, shape index: {}]
  %s1 = inlined_call_operand.hbm [shape: f32[2,1,256], index: 1, kind: input, shape index: {}]
  %s2 = inlined_call_operand.vmem [shape: f32[2,1,1], index: 2, kind: output, shape index: {}]
  %s3 = sld [smem:[#allocation0]]
  $region49: #{tpu_custom_call.1} parent=0
    _
  %s5 = ssub.s32 1, %s3
  %s6 = scalar_select 0, %s5, %s3
  $region1: #{tpu_custom_call.1} parent=0
    #allocation2 [shape = 'u8[8192]{0}', space=vmem, size = 0x2000, scoped, tag = 'input window, operand 0']
    #allocation3 [shape = 's32[2]{0}', space=sflag, size = 0x8, scoped, tag = 'scoped memory for tpu_custom_call.1']
    #allocation4 [shape = 'u8[2048]{0}', space=vmem, size = 0x800, scoped, tag = 'input window, operand 1']
    #allocation5 [shape = 's32[2]{0}', space=sflag, size = 0x8, scoped, tag = 'scoped memory for tpu_custom_call.1']
    %7 = vsyncpa [#allocation3], 0
    %s8 = scalar_lea.sflag [#allocation3], 1
    %9 = vsyncpa %s8, 0
    %10 = vsyncpa [#allocation5], 0
    %s11 = scalar_lea.sflag [#allocation5], 1
    %12 = vsyncpa %s11, 0
    loop: start=0, step=1, limit=4
    $region2: #{tpu_custom_call.1} parent=1 // loop_pre_header
      _
    $region3: #{tpu_custom_call.1} parent=1 // loop_header
      %s14 = sphi 0, %s18
      %p15 = scmp.ge.s32.totalorder %s14, 4
      %s21 = sphi 0, %s33
      %s22 = sphi 0, %s29
      %s23 = sphi 0, %s21
      %s24 = sphi 0, %s22
      %s25 = sphi 0, %s23
      %s26 = sphi 0, %s24
      %s38 = sphi 0, %s40
      %s41 = sphi 0, %s38
      %s42 = sphi 0, %s41
      %s58 = sphi 0, %s42
      %s66 = sphi 0, %s68
      %s69 = sphi 0, %s66
      %s70 = sphi 0, %s69
      %s86 = sphi 0, %s70
      %s94 = sphi 0, %s96
      %s97 = sphi 0, %s94
      %s98 = sphi 0, %s97
      %s114 = sphi 0, %s98
    $region4: #{tpu_custom_call.1} parent=1 // loop_header_branch
      %17 = sbr.rel (%p15) target = $region8
    $region5: #{tpu_custom_call.1} parent=1 // loop_body
      %s19 = ssub.s32 %s14, 1
      %s20 = ssub.s32 %s14, 2
      %s27 = sadd.s32 1, %s22
      %p28 = scmp.ge.s32.totalorder %s27, 1
      %s29 = scalar_select %p28, 0, %s27
      %s30 = sadd.s32 1, %s21
      %s31 = scalar_select %p28, %s30, %s21
      %p32 = scmp.ge.s32.totalorder %s31, 2
      %s33 = scalar_select %p32, 0, %s31
      %s34 = ssub.s32 %s21, %s33
      %s35 = ssub.s32 %s22, %s29
      %s36 = sor.u32 %s34, %s35
      %p37 = scmp.eq.s32.totalorder %s36, 0
      %s39 = sadd.s32 %s38, 1
      %s40 = scalar_select %p37, %s38, %s39
      %p43 = pneg %p37
      %p44 = scmp.eq.s32.totalorder %s14, 1
      %p45 = por %p43, %p44
      %p46 = scmp.ne.s32.totalorder %s38, %s41
      %p47 = scmp.eq.s32.totalorder %s14, 0
      %p48 = por %p46, %p47
      %p49 = scmp.ne.s32.totalorder %s38, %s41
      %p50 = scmp.eq.s32.totalorder %s19, 1
      %p51 = por %p49, %p50
      %p52 = scmp.ne.s32.totalorder %s41, %s42
      %p53 = scmp.eq.s32.totalorder %s19, 0
      %p54 = por %p52, %p53
      %p55 = scmp.ne.s32.totalorder %s41, %s42
      %p56 = scmp.eq.s32.totalorder %s20, 1
      %p57 = por %p55, %p56
      %p59 = scmp.ne.s32.totalorder %s42, %s58
      %p60 = scmp.eq.s32.totalorder %s20, 0
      %p61 = por %p59, %p60
      %s62 = ssub.s32 %s21, %s33
      %s63 = ssub.s32 %s22, %s29
      %s64 = sor.u32 %s62, %s63
      %p65 = scmp.eq.s32.totalorder %s64, 0
      %s67 = sadd.s32 %s66, 1
      %s68 = scalar_select %p65, %s66, %s67
      %p71 = pneg %p65
      %p72 = scmp.eq.s32.totalorder %s14, 1
      %p73 = por %p71, %p72
      %p74 = scmp.ne.s32.totalorder %s66, %s69
      %p75 = scmp.eq.s32.totalorder %s14, 0
      %p76 = por %p74, %p75
      %p77 = scmp.ne.s32.totalorder %s66, %s69
      %p78 = scmp.eq.s32.totalorder %s19, 1
      %p79 = por %p77, %p78
      %p80 = scmp.ne.s32.totalorder %s69, %s70
      %p81 = scmp.eq.s32.totalorder %s19, 0
      %p82 = por %p80, %p81
      %p83 = scmp.ne.s32.totalorder %s69, %s70
      %p84 = scmp.eq.s32.totalorder %s20, 1
      %p85 = por %p83, %p84
      %p87 = scmp.ne.s32.totalorder %s70, %s86
      %p88 = scmp.eq.s32.totalorder %s20, 0
      %p89 = por %p87, %p88
      %s90 = sadd.s32 %s21, %s22
      %s91 = sadd.s32 %s33, %s29
      %s92 = ssub.s32 %s90, %s91
      %p93 = scmp.eq.s32.totalorder %s92, 0
      %s95 = sadd.s32 %s94, 1
      %s96 = scalar_select %p93, %s94, %s95
      %p99 = pneg %p93
      %p100 = scmp.eq.s32.totalorder %s14, 1
      %p101 = por %p99, %p100
      %p102 = scmp.ne.s32.totalorder %s94, %s97
      %p103 = scmp.eq.s32.totalorder %s14, 0
      %p104 = por %p102, %p103
      %p105 = scmp.ne.s32.totalorder %s94, %s97
      %p106 = scmp.eq.s32.totalorder %s19, 1
      %p107 = por %p105, %p106
      %p108 = scmp.ne.s32.totalorder %s97, %s98
      %p109 = scmp.eq.s32.totalorder %s19, 0
      %p110 = por %p108, %p109
      %p111 = scmp.ne.s32.totalorder %s97, %s98
      %p112 = scmp.eq.s32.totalorder %s20, 1
      %p113 = por %p111, %p112
      %p115 = scmp.ne.s32.totalorder %s98, %s114
      %p116 = scmp.eq.s32.totalorder %s20, 0
      %p117 = por %p115, %p116
      %p118 = scmp.le.s32.totalorder 1, %s14
      %p119 = scmp.lt.s32.totalorder %s14, 3
      %p120 = pnand %p118, %p119
      %p121 = pneg %p120
      // Predicated region
      $region9: #{tpu_custom_call.1} parent=5 // pred_check
        _
      $region10: #{tpu_custom_call.1} parent=5 // pred_check_branch
        %123 = sbr.rel (%p120) target = $region12
      $region11: #{tpu_custom_call.1} parent=5 // pred_region
        %s124 = ssub.s32 %s14, 1
      $region12: #{tpu_custom_call.1} parent=5 // pred_fallthru
        _
      %p125 = scmp.lt.s32.totalorder %s14, 2
      // Predicated region
      $region13: #{tpu_custom_call.1} parent=5 // pred_check
        %p126 = pneg %p125
      $region14: #{tpu_custom_call.1} parent=5 // pred_check_branch
        %128 = sbr.rel (%p126) target = $region16
      $region15: #{tpu_custom_call.1} parent=5 // pred_region
        // Predicated region
        $region17: #{tpu_custom_call.1} parent=15 // pred_check
          %p129 = pneg %p48
        $region18: #{tpu_custom_call.1} parent=15 // pred_check_branch
          %131 = sbr.rel (%p129) target = $region20
        $region19: #{tpu_custom_call.1} parent=15 // pred_region
          %s132 = sand.u32 %s38, 1
          %s133 = scalar_lea.sflag [#allocation3], %s132
          %s134 = sand.u32 %s38, 1
          %s135 = smul.addr %s134, 8
          %s136 = scalar_lea.vmem [#allocation2], %s135
          %s137 = smul.u32 2, %s22
          %139 = vsyncadd %s133, 0
          %s140 = smul.addr %s21, 2
          %s141 = sadd.s32 %s137, %s140
          %s142 = smul.addr %s141, 4
          %s143 = scalar_lea.hbm %s0, %s142
          %s145 = sshll.u32 %s143, 4
          %s146 = int_to_ptr.hbm [resolvable:$true] %s145
          %s147 = sshll.u32 %s136, 4
          %s148 = int_to_ptr.vmem [resolvable:$true] %s147
          %150 = dma.hbm_to_vmem [thread:$0]  %s146, 128, %s148, %s133
        $region20: #{tpu_custom_call.1} parent=15 // pred_fallthru
          _
        // Predicated region
        $region21: #{tpu_custom_call.1} parent=15 // pred_check
          %p151 = pneg %p76
        $region22: #{tpu_custom_call.1} parent=15 // pred_check_branch
          %153 = sbr.rel (%p151) target = $region24
        $region23: #{tpu_custom_call.1} parent=15 // pred_region
          %s154 = sand.u32 %s66, 1
          %s155 = scalar_lea.sflag [#allocation5], %s154
          %s156 = sand.u32 %s66, 1
          %s157 = smul.addr %s156, 2
          %s158 = scalar_lea.vmem [#allocation4], %s157
          %s159 = smul.u32 2, %s22
          %161 = vsyncadd %s155, 0
          %s162 = smul.addr %s21, 2
          %s163 = sadd.s32 %s159, %s162
          %s164 = scalar_lea.hbm %s1, %s163
          %s166 = sshll.u32 %s164, 4
          %s167 = int_to_ptr.hbm [resolvable:$true] %s166
          %s168 = sshll.u32 %s158, 4
          %s169 = int_to_ptr.vmem [resolvable:$true] %s168
          %171 = dma.hbm_to_vmem [thread:$0]  %s167, 32, %s169, %s155
        $region24: #{tpu_custom_call.1} parent=15 // pred_fallthru
          _
      $region16: #{tpu_custom_call.1} parent=5 // pred_fallthru
        _
      %p172 = scmp.le.s32.totalorder 1, %s14
      %p173 = scmp.lt.s32.totalorder %s14, 3
      %p174 = pnand %p172, %p173
      %p175 = pneg %p174
      // Predicated region
      $region25: #{tpu_custom_call.1} parent=5 // pred_check
        _
      $region26: #{tpu_custom_call.1} parent=5 // pred_check_branch
        %177 = sbr.rel (%p174) target = $region28
      $region27: #{tpu_custom_call.1} parent=5 // pred_region
        %s178 = ssub.s32 %s14, 1
        %s179 = sand.u32 %s41, 1
        %s180 = scalar_lea.sflag [#allocation3], %s179
        %s181 = sand.u32 %s41, 1
        %s182 = smul.addr %s181, 8
        %s183 = scalar_lea.vmem [#allocation2], %s182
        // Predicated region
        $region29: #{tpu_custom_call.1} parent=27 // pred_check
          %p184 = pneg %p54
        $region30: #{tpu_custom_call.1} parent=27 // pred_check_branch
          %186 = sbr.rel (%p184) target = $region32
        $region31: #{tpu_custom_call.1} parent=27 // pred_region
          %188 = dma.done %s180, 128
        $region32: #{tpu_custom_call.1} parent=27 // pred_fallthru
          _
        %s189 = sand.u32 %s69, 1
        %s190 = scalar_lea.sflag [#allocation5], %s189
        %s191 = sand.u32 %s69, 1
        %s192 = smul.addr %s191, 2
        %s193 = scalar_lea.vmem [#allocation4], %s192
        // Predicated region
        $region33: #{tpu_custom_call.1} parent=27 // pred_check
          %p194 = pneg %p82
        $region34: #{tpu_custom_call.1} parent=27 // pred_check_branch
          %196 = sbr.rel (%p194) target = $region36
        $region35: #{tpu_custom_call.1} parent=27 // pred_region
          %198 = dma.done %s190, 32
        $region36: #{tpu_custom_call.1} parent=27 // pred_fallthru
          _
        %s199 = sand.u32 %s41, 1
        %s200 = scalar_lea.sflag [#allocation3], %s199
        %s201 = sand.u32 %s41, 1
        %s202 = smul.addr %s201, 8
        %s203 = scalar_lea.vmem [#allocation2], %s202
        %p204 = pneg %p54
        %p205 = pneg %p51
        %s206 = sand.u32 %s69, 1
        %s207 = scalar_lea.sflag [#allocation5], %s206
        %s208 = sand.u32 %s69, 1
        %s209 = smul.addr %s208, 2
        %s210 = scalar_lea.vmem [#allocation4], %s209
        %p211 = pneg %p82
        %p212 = pneg %p79
        %p213 = pneg %p110
        %p214 = pneg %p107
        %s215 = sadd.s32 %s23, %s24
        %p216 = scmp.lt.s32.totalorder %s215, 1
        %s217 = scalar_select %p216, %s215, 1
        %s218 = scalar_lea.vmem %s2, %s217
        %s219 = smul.u32 2, %s24
        %s220 = smul.u32 2, %s24
        %s221 = sadd.s32 %s23, %s24
        %p222 = scmp.lt.s32.totalorder %s221, 1
        %s223 = scalar_select %p222, %s221, 1
        %s224 = scalar_lea.vmem %s2, %s223
        %s225 = sadd.s32 %s23, %s24
        %v226 = vld [vmem:[%s183] sm:$0xff]
        %v227 = vld [vmem:[%s193] sm:$0x3]
        %v229 = vperm.slane %v226, 1
        %v230 = vperm.slane %v226, 5
        %v233 = vperm.slane %v229, 1
        %v234 = vperm.slane %v230, 1
        %v237 = vrot.slane %v234, 4
        %vm238 = vcmask 1043456
        %v239 = vsel %vm238, %v233, %v237
        %v241 = vsub.f32 %v226, %v239
        %v242 = vmul.f32 %v241, 1.442695
        %v243 = vpow.pop %v242
        %245 = vst [vmem:[#allocation1] ss:$2 sm:$0xff] %v243
        %v246 = vld.sshfl [vmem:[#allocation1] sm:$0xff pattern:$0x75316420]
        %v247 = vld.sshfl [vmem:[#allocation1 + $0x8] sm:$0xff pattern:$0x75316420]
        %v250 = vsel %vm238, %v246, 0.0
        %v251 = vrot.slane %v250, 4
        %v252 = vadd.f32 %v250, %v251
        %v253 = vrot.slane %v252, 2
        %v254 = vadd.f32 %v252, %v253
        %v255 = vrot.slane %v254, 1
        %v256 = vadd.f32 %v254, %v255
        %v257 = vsel %vm238, %v247, 0.0
        %v258 = vrot.slane %v257, 4
        %v259 = vadd.f32 %v257, %v258
        %v260 = vrot.slane %v259, 2
        %v261 = vadd.f32 %v259, %v260
        %v262 = vrot.slane %v261, 1
        %v263 = vadd.f32 %v261, %v262
        %v266 = vrot.slane %v263, 7
        %vm267 = vcmask 1040384
        %v268 = vsel %vm267, %v256, %v266
        %v270 = vrcp.pop %v268
        %v271 = vmul.f32 %v268, %v270
        %v272 = vsub.f32 1.0, %v271
        %v273 = vmul.f32 %v270, %v272
        %v274 = vadd.f32 %v270, %v273
        %vm275 = vweird.f32 %v268
        %vm276 = vweird.f32 %v270
        %vm277 = vmor %vm275, %vm276
        %v278 = vsel %vm277, %v270, %v274
        %v279 = vand.u32 2147483647, %v268
        %vm280 = vcmp.eq.f32.partialorder %v279, 8.507059e+37
        %v281 = vand.u32 %v268, 2147483648
        %v282 = vor.u32 1.1754944e-38, %v281
        %v283 = vsel %vm280, %v282, %v278
        %v284 = vmul.f32 %v227, %v283
        %v286 = vperm.slane %v284, 0
        %v287 = vperm.slane %v284, 1
        %v290 = vsel %vm267, %v286, 0.0
        %v291 = vsel %vm267, %v287, 0.0
        %v292 = vadd.f32 %v290, %v291
        %293 = vadd.xlane.f32.xlu0 %v292
        %v294 = vpop.xlane.xlu0 %293
        %vm295 = vcmask 0
        %296 = vst.msk [vmem:[%s224] sm:$0x1] %vm295, %v294
        %s297 = sadd.s32 %s23, %s24
        %p298 = scmp.lt.s32.totalorder %s297, 1
        %s299 = scalar_select %p298, %s297, 1
        %s300 = scalar_lea.vmem %s2, %s299
        // Predicated region
        $region37: #{tpu_custom_call.1} parent=27 // pred_check
          %p301 = pneg %p107
        $region38: #{tpu_custom_call.1} parent=27 // pred_check_branch
          %303 = sbr.rel (%p301) target = $region40
        $region39: #{tpu_custom_call.1} parent=27 // pred_region
          %s304 = sadd.s32 %s23, %s24
        $region40: #{tpu_custom_call.1} parent=27 // pred_fallthru
          _
      $region28: #{tpu_custom_call.1} parent=5 // pred_fallthru
        _
      %p305 = scmp.le.s32.totalorder 2, %s14
      // Predicated region
      $region41: #{tpu_custom_call.1} parent=5 // pred_check
        %p306 = pneg %p305
      $region42: #{tpu_custom_call.1} parent=5 // pred_check_branch
        %308 = sbr.rel (%p306) target = $region44
      $region43: #{tpu_custom_call.1} parent=5 // pred_region
        %s309 = ssub.s32 %s14, 2
        // Predicated region
        $region45: #{tpu_custom_call.1} parent=43 // pred_check
          %p310 = pneg %p113
        $region46: #{tpu_custom_call.1} parent=43 // pred_check_branch
          %312 = sbr.rel (%p310) target = $region48
        $region47: #{tpu_custom_call.1} parent=43 // pred_region
          %s313 = sadd.s32 %s25, %s26
          %p314 = scmp.lt.s32.totalorder %s313, 1
          %s315 = scalar_select %p314, %s313, 1
          %s316 = scalar_lea.vmem %s2, %s315
        $region48: #{tpu_custom_call.1} parent=43 // pred_fallthru
          _
      $region44: #{tpu_custom_call.1} parent=5 // pred_fallthru
        _
    $region6: #{tpu_custom_call.1} parent=1 // loop_footer
      %s18 = sadd.s32 1, %s14
    $region7: #{tpu_custom_call.1} parent=1 // loop_footer_branch
      %13 = sbr.rel target = $region3
    $region8: #{tpu_custom_call.1} parent=1 // loop_exit
      _
    %317 = vsyncpa [#allocation3], 1
    %s318 = scalar_lea.sflag [#allocation3], 1
    %319 = vsyncpa %s318, 1
    %320 = vsyncpa [#allocation5], 1
    %s321 = scalar_lea.sflag [#allocation5], 1
    %322 = vsyncpa %s321, 1

</llo_original>
